<compile_context>
chip_gen: v7x
topology: tpu7x:2x2x1
jax: 0.10.0
libtpu: 0.0.40
codegen_flags: <defaults>
</compile_context>

<pallas_src>
import functools

import jax
import jax.numpy as jnp
from jax.experimental import pallas as pl
from jax.experimental.pallas import tpu as pltpu

IN_F, H1, H2, H3, OUT_F = 42, 32, 64, 128, 3
N_LAYERS = 4
PAD = 128          # packed weight tile width (lane-dense)
K0 = 48            # layer-0 contraction: IN_F rounded up to the sublane width 8


def mlp_kernel(x_ref, w_ref, b_ref, o_ref):
    # x_ref: (TB, 42)  w_ref: (4, 128, 128)  b_ref: (4, 1, 128)  o_ref: (TB, 3)
    cdt = w_ref.dtype                 # f32 (exact) or bf16 (fast MXU on v6e/v7x)
    tb = x_ref.shape[0]

    x = x_ref[...].astype(cdt)                                            # (TB, 42)
    # Zero-pad lanes 42..47 in-kernel so the layer-0 contraction is 8-aligned.
    h = jnp.concatenate([x, jnp.zeros((tb, K0 - IN_F), cdt)], axis=-1)    # (TB, 48)

    # Every layer produces a lane-dense (TB, 128) activation whose padded lanes are
    # exactly zero (zero weight cols, zero bias lanes, ReLU), so contracting only
    # over the real K of the next layer is exact.
    h = jnp.maximum(
        jnp.dot(h, w_ref[0][:K0, :], preferred_element_type=jnp.float32)
        + b_ref[0], 0.0)
    h = jnp.maximum(
        jnp.dot(h[:, :H1].astype(cdt), w_ref[1][:H1, :],
                preferred_element_type=jnp.float32) + b_ref[1], 0.0)
    h = jnp.maximum(
        jnp.dot(h[:, :H2].astype(cdt), w_ref[2][:H2, :],
                preferred_element_type=jnp.float32) + b_ref[2], 0.0)
    y = jnp.dot(h.astype(cdt), w_ref[3],
                preferred_element_type=jnp.float32) + b_ref[3]            # (TB, 128)
    o_ref[...] = y[:, :OUT_F].astype(o_ref.dtype)   # narrow (TB, 3) store


def _round_up(v, m):
    return (v + m - 1) // m * m


def _pick_block_b(B):
    if B <= 256:
        return _round_up(B, 8)                 # one small tile
    if B <= 4096:
        return _round_up((B + 1) // 2, 256)    # two tiles -> both v7x TCs busy
    return 2048                                # big tiles amortize ~0.35 us/step


@functools.partial(jax.jit, static_argnames=("block_b",))
def mlp_forward(x, w_packed, b_packed, *, block_b=None):
    """x: (B, 42) f32; w_packed: (4,128,128); b_packed: (4,1,128) f32 -> (B, 3) f32."""
    B = x.shape[0]
    if block_b is None:
        block_b = _pick_block_b(B)
    b_pad = _round_up(max(B, block_b), block_b)

    # Only pad the batch (rows) if needed; feature dim stays at 42 (no lane pad).
    x_in = x if b_pad == B else jnp.zeros((b_pad, IN_F), x.dtype).at[:B].set(x)

    grid = (b_pad // block_b,)
    flops = 2 * B * (IN_F * H1 + H1 * H2 + H2 * H3 + H3 * OUT_F)
    bytes_accessed = (x_in.size * x_in.dtype.itemsize
                      + w_packed.size * w_packed.dtype.itemsize
                      + b_packed.size * b_packed.dtype.itemsize
                      + b_pad * OUT_F * 4)

    out = pl.pallas_call(
        mlp_kernel,
        out_shape=jax.ShapeDtypeStruct((b_pad, OUT_F), jnp.float32),
        grid_spec=pltpu.PrefetchScalarGridSpec(
            num_scalar_prefetch=0,
            grid=grid,
            in_specs=[
                # Activations: pipelined per batch tile; last dim = full 42 lanes.
                pl.BlockSpec((block_b, IN_F), lambda i: (i, 0)),
                # Packed weights / biases: constant block index -> DMA'd once,
                # resident in VMEM across all grid steps.
                pl.BlockSpec((N_LAYERS, PAD, PAD), lambda i: (0, 0, 0)),
                pl.BlockSpec((N_LAYERS, 1, PAD), lambda i: (0, 0, 0)),
            ],
            # Narrow (block_b, 3) output block: ~42x less HBM writeback than 128-wide.
            out_specs=pl.BlockSpec((block_b, OUT_F), lambda i: (i, 0)),
        ),
        compiler_params=pltpu.CompilerParams(
            dimension_semantics=("parallel",),   # shards tiles over v7x's 2 TCs
        ),
        cost_estimate=pl.CostEstimate(
            flops=flops, transcendentals=0, bytes_accessed=bytes_accessed),
    )(x_in, w_packed, b_packed)

    return out[:B]


def init_linear(key, fan_in, fan_out):
    # Mimic PyTorch nn.Linear default init: U(-1/sqrt(fan_in), 1/sqrt(fan_in)).
    kw, kb = jax.random.split(key)
    bound = 1.0 / jnp.sqrt(jnp.float32(fan_in))
    # Stored as (in, out) so the kernel computes x @ W (transposed vs. PyTorch).
    w = jax.random.uniform(kw, (fan_in, fan_out), jnp.float32, -bound, bound)
    b = jax.random.uniform(kb, (1, fan_out), jnp.float32, -bound, bound)
    return w, b


def make_params(key):
    k1, k2, k3, k4 = jax.random.split(key, 4)
    return (
        init_linear(k1, IN_F, H1),
        init_linear(k2, H1, H2),
        init_linear(k3, H2, H3),
        init_linear(k4, H3, OUT_F),
    )


def pack_params(params, dtype=jnp.float32):
    """Zero-pad every layer to (128,128)/(1,128) and stack into 2 DMA-able buffers.

    `dtype` sets the weight/matmul dtype: float32 (bit-faithful to the PyTorch
    module) or bfloat16 (v6e/v7x bf16-native MXU, halved weight DMA). Biases and
    accumulation stay float32 either way.
    """
    dims = [(IN_F, H1), (H1, H2), (H2, H3), (H3, OUT_F)]
    w_packed = jnp.zeros((N_LAYERS, PAD, PAD), dtype)
    b_packed = jnp.zeros((N_LAYERS, 1, PAD), jnp.float32)
    for layer, ((w, b), (k, n)) in enumerate(zip(params, dims)):
        w_packed = w_packed.at[layer, :k, :n].set(w.astype(dtype))
        b_packed = b_packed.at[layer, 0, :n].set(b.reshape(-1))
    return w_packed, b_packed


def mlp_reference(x, params):
    h = x
    for i, (w, b) in enumerate(params):
        h = h @ w + b
        if i < len(params) - 1:
            h = jnp.maximum(h, 0.0)
    return h


if __name__ == "__main__":
    key = jax.random.PRNGKey(0)
    kx, kp = jax.random.split(key)

    B = 8
    x = jax.random.normal(kx, (B, IN_F), jnp.float32)
    params = make_params(kp)
    ref = mlp_reference(x, params)

    # Exact (f32-weight) path -- bit-faithful to the PyTorch f32 module.
    w32, b32 = pack_params(params, dtype=jnp.float32)
    out = mlp_forward(x, w32, b32)
    jax.block_until_ready(out)
    assert out.shape == (B, OUT_F), out.shape
    assert jnp.allclose(out, ref, atol=1e-4, rtol=1e-4), "f32 mismatch vs reference"

    # bf16-weight fast path (v6e/v7x MXU lever from the review) -- looser tolerance.
    wbf, bbf = pack_params(params, dtype=jnp.bfloat16)
    out_bf = mlp_forward(x, wbf, bbf)
    jax.block_until_ready(out_bf)
    assert jnp.allclose(out_bf, ref, atol=5e-2, rtol=5e-2), "bf16 mismatch vs reference"

    print("KERNEL_OK")
</pallas_src>

<mosaic_0001>
module attributes {stable_mosaic.version = 11 : i64} {
  func.func @mlp_kernel(%arg0: i32, %arg1: memref<8x42xf32, #tpu.memory_space<vmem>>, %arg2: memref<4x128x128xf32, #tpu.memory_space<vmem>>, %arg3: memref<4x1x128xf32, #tpu.memory_space<vmem>>, %arg4: memref<8x3xf32, #tpu.memory_space<vmem>>) attributes {dimension_semantics = [#tpu.dimension_semantics<parallel>], iteration_bounds = array<i64: 1>, scalar_prefetch = 0 : i64, scratch_operands = 0 : i64, tpu.core_type = #tpu.core_type<tc>, window_params = [{transform_indices = @transform_0, window_bounds = array<i64: 8, 42>}, {pipeline_mode = #tpu.pipeline_mode<synchronous>, transform_indices = @transform_1, window_bounds = array<i64: 4, 128, 128>}, {pipeline_mode = #tpu.pipeline_mode<synchronous>, transform_indices = @transform_2, window_bounds = array<i64: 4, 1, 128>}, {transform_indices = @transform_3, window_bounds = array<i64: 8, 3>}]} {
    %c0 = arith.constant 0 : index
    %c0_0 = arith.constant 0 : index
    %0 = vector.load %arg1[%c0, %c0_0] : memref<8x42xf32, #tpu.memory_space<vmem>>, vector<8x42xf32>
    %cst = arith.constant 0.000000e+00 : f32
    %1 = vector.broadcast %cst : f32 to vector<8x6xf32>
    %2 = tpu.concatenate %0, %1 in 1 : vector<8x42xf32>, vector<8x6xf32> -> vector<8x48xf32>
    %c0_1 = arith.constant 0 : index
    %c0_2 = arith.constant 0 : index
    %c0_3 = arith.constant 0 : index
    %3 = vector.load %arg2[%c0_1, %c0_2, %c0_3] : memref<4x128x128xf32, #tpu.memory_space<vmem>>, vector<1x128x128xf32>
    %4 = vector.shape_cast %3 : vector<1x128x128xf32> to vector<128x128xf32>
    %5 = vector.extract_strided_slice %4 {offsets = [0, 0], sizes = [48, 128], strides = [1, 1]} : vector<128x128xf32> to vector<48x128xf32>
    %cst_4 = arith.constant dense<0.000000e+00> : vector<8x128xf32>
    %6 = tpu.matmul %2, %5, %cst_4 {dimension_numbers = #tpu.dot_dimension_numbers<[1], [0], [0], [1], [0, 0, 1, 1], [], []>} : vector<8x48xf32>, vector<48x128xf32>, vector<8x128xf32> -> vector<8x128xf32>
    %c0_5 = arith.constant 0 : index
    %c0_6 = arith.constant 0 : index
    %c0_7 = arith.constant 0 : index
    %7 = vector.load %arg3[%c0_5, %c0_6, %c0_7] : memref<4x1x128xf32, #tpu.memory_space<vmem>>, vector<1x1x128xf32>
    %8 = vector.shape_cast %7 : vector<1x1x128xf32> to vector<1x128xf32>
    %9 = vector.broadcast %8 : vector<1x128xf32> to vector<8x128xf32>
    %10 = arith.addf %6, %9 : vector<8x128xf32>
    %cst_8 = arith.constant 0.000000e+00 : f32
    %11 = vector.broadcast %cst_8 : f32 to vector<8x128xf32>
    %12 = arith.maximumf %10, %11 : vector<8x128xf32>
    %13 = vector.extract_strided_slice %12 {offsets = [0, 0], sizes = [8, 32], strides = [1, 1]} : vector<8x128xf32> to vector<8x32xf32>
    %c1 = arith.constant 1 : index
    %c0_9 = arith.constant 0 : index
    %c0_10 = arith.constant 0 : index
    %14 = vector.load %arg2[%c1, %c0_9, %c0_10] : memref<4x128x128xf32, #tpu.memory_space<vmem>>, vector<1x128x128xf32>
    %15 = vector.shape_cast %14 : vector<1x128x128xf32> to vector<128x128xf32>
    %16 = vector.extract_strided_slice %15 {offsets = [0, 0], sizes = [32, 128], strides = [1, 1]} : vector<128x128xf32> to vector<32x128xf32>
    %cst_11 = arith.constant dense<0.000000e+00> : vector<8x128xf32>
    %17 = tpu.matmul %13, %16, %cst_11 {dimension_numbers = #tpu.dot_dimension_numbers<[1], [0], [0], [1], [0, 0, 1, 1], [], []>} : vector<8x32xf32>, vector<32x128xf32>, vector<8x128xf32> -> vector<8x128xf32>
    %c1_12 = arith.constant 1 : index
    %c0_13 = arith.constant 0 : index
    %c0_14 = arith.constant 0 : index
    %18 = vector.load %arg3[%c1_12, %c0_13, %c0_14] : memref<4x1x128xf32, #tpu.memory_space<vmem>>, vector<1x1x128xf32>
    %19 = vector.shape_cast %18 : vector<1x1x128xf32> to vector<1x128xf32>
    %20 = vector.broadcast %19 : vector<1x128xf32> to vector<8x128xf32>
    %21 = arith.addf %17, %20 : vector<8x128xf32>
    %cst_15 = arith.constant 0.000000e+00 : f32
    %22 = vector.broadcast %cst_15 : f32 to vector<8x128xf32>
    %23 = arith.maximumf %21, %22 : vector<8x128xf32>
    %24 = vector.extract_strided_slice %23 {offsets = [0, 0], sizes = [8, 64], strides = [1, 1]} : vector<8x128xf32> to vector<8x64xf32>
    %c2 = arith.constant 2 : index
    %c0_16 = arith.constant 0 : index
    %c0_17 = arith.constant 0 : index
    %25 = vector.load %arg2[%c2, %c0_16, %c0_17] : memref<4x128x128xf32, #tpu.memory_space<vmem>>, vector<1x128x128xf32>
    %26 = vector.shape_cast %25 : vector<1x128x128xf32> to vector<128x128xf32>
    %27 = vector.extract_strided_slice %26 {offsets = [0, 0], sizes = [64, 128], strides = [1, 1]} : vector<128x128xf32> to vector<64x128xf32>
    %cst_18 = arith.constant dense<0.000000e+00> : vector<8x128xf32>
    %28 = tpu.matmul %24, %27, %cst_18 {dimension_numbers = #tpu.dot_dimension_numbers<[1], [0], [0], [1], [0, 0, 1, 1], [], []>} : vector<8x64xf32>, vector<64x128xf32>, vector<8x128xf32> -> vector<8x128xf32>
    %c2_19 = arith.constant 2 : index
    %c0_20 = arith.constant 0 : index
    %c0_21 = arith.constant 0 : index
    %29 = vector.load %arg3[%c2_19, %c0_20, %c0_21] : memref<4x1x128xf32, #tpu.memory_space<vmem>>, vector<1x1x128xf32>
    %30 = vector.shape_cast %29 : vector<1x1x128xf32> to vector<1x128xf32>
    %31 = vector.broadcast %30 : vector<1x128xf32> to vector<8x128xf32>
    %32 = arith.addf %28, %31 : vector<8x128xf32>
    %cst_22 = arith.constant 0.000000e+00 : f32
    %33 = vector.broadcast %cst_22 : f32 to vector<8x128xf32>
    %34 = arith.maximumf %32, %33 : vector<8x128xf32>
    %c3 = arith.constant 3 : index
    %c0_23 = arith.constant 0 : index
    %c0_24 = arith.constant 0 : index
    %35 = vector.load %arg2[%c3, %c0_23, %c0_24] : memref<4x128x128xf32, #tpu.memory_space<vmem>>, vector<1x128x128xf32>
    %36 = vector.shape_cast %35 : vector<1x128x128xf32> to vector<128x128xf32>
    %cst_25 = arith.constant dense<0.000000e+00> : vector<8x128xf32>
    %37 = tpu.matmul %34, %36, %cst_25 {dimension_numbers = #tpu.dot_dimension_numbers<[1], [0], [0], [1], [0, 0, 1, 1], [], []>} : vector<8x128xf32>, vector<128x128xf32>, vector<8x128xf32> -> vector<8x128xf32>
    %c3_26 = arith.constant 3 : index
    %c0_27 = arith.constant 0 : index
    %c0_28 = arith.constant 0 : index
    %38 = vector.load %arg3[%c3_26, %c0_27, %c0_28] : memref<4x1x128xf32, #tpu.memory_space<vmem>>, vector<1x1x128xf32>
    %39 = vector.shape_cast %38 : vector<1x1x128xf32> to vector<1x128xf32>
    %40 = vector.broadcast %39 : vector<1x128xf32> to vector<8x128xf32>
    %41 = arith.addf %37, %40 : vector<8x128xf32>
    %42 = vector.extract_strided_slice %41 {offsets = [0, 0], sizes = [8, 3], strides = [1, 1]} : vector<8x128xf32> to vector<8x3xf32>
    %c0_29 = arith.constant 0 : index
    %c0_30 = arith.constant 0 : index
    %43 = vector.load %arg4[%c0_29, %c0_30] : memref<8x3xf32, #tpu.memory_space<vmem>>, vector<8x3xf32>
    tpu.vector_store %arg4[%c0_29, %c0_30], %42 {strides = array<i32>} : memref<8x3xf32, #tpu.memory_space<vmem>>, vector<8x3xf32>,
    return
  }
  func.func @transform_0(%arg0: i32) -> (i32, i32) {
    %c0_i32 = arith.constant 0 : i32
    %c0_i32_0 = arith.constant 0 : i32
    return %arg0, %c0_i32 : i32, i32
  }
  func.func @transform_1(%arg0: i32) -> (i32, i32, i32) {
    %c0_i32 = arith.constant 0 : i32
    %c0_i32_0 = arith.constant 0 : i32
    %c0_i32_1 = arith.constant 0 : i32
    %c0_i32_2 = arith.constant 0 : i32
    return %c0_i32, %c0_i32_0, %c0_i32_1 : i32, i32, i32
  }
  func.func @transform_2(%arg0: i32) -> (i32, i32, i32) {
    %c0_i32 = arith.constant 0 : i32
    %c0_i32_0 = arith.constant 0 : i32
    %c0_i32_1 = arith.constant 0 : i32
    %c0_i32_2 = arith.constant 0 : i32
    return %c0_i32, %c0_i32_0, %c0_i32_1 : i32, i32, i32
  }
  func.func @transform_3(%arg0: i32) -> (i32, i32) {
    %c0_i32 = arith.constant 0 : i32
    %c0_i32_0 = arith.constant 0 : i32
    return %arg0, %c0_i32 : i32, i32
  }
}

</mosaic_0001>

<llo_original>
// kernel: mlp_forward.1
$region0: #{mlp_forward.1}
  #allocation0 [shape = 'u32[]', space=smem, size = 0x4, offset = 0x4, fixed_abs, tag = 'smem constant byte address 0x4 - core index']
  #allocation1 [shape = 'u32[144,128]{1,0:T(1,128)}', space=vmem, size = 0x12000, scoped, tag = 'internal scratch']
  %s0 = inlined_call_operand.hbm [shape: f32[8,42], index: 0, kind: input, shape index: {}]
  %s1 = inlined_call_operand.hbm [shape: f32[4,128,128], index: 1, kind: input, shape index: {}]
  %s2 = inlined_call_operand.vmem [shape: f32[4,1,128], index: 2, kind: input, shape index: {}]
  %s3 = inlined_call_operand.vmem [shape: f32[8,3], index: 3, kind: output, shape index: {}]
  %s4 = sld [smem:[#allocation0]]
  $region30: #{mlp_forward.1} parent=0
    _
  %s6 = ssub.s32 1, %s4
  %s7 = scalar_select 0, %s6, %s4
  $region1: #{mlp_forward.1} parent=0
    #allocation2 [shape = 'u8[4096]{0}', space=vmem, size = 0x1000, scoped, tag = 'input window, operand 0, single buffered']
    #allocation3 [shape = 's32[1]{0}', space=sflag, size = 0x4, scoped, tag = 'scoped memory for mlp_forward.1']
    #allocation4 [shape = 'u8[262144]{0}', space=vmem, size = 0x40000, scoped, tag = 'input window, operand 1, single buffered']
    #allocation5 [shape = 's32[1]{0}', space=sflag, size = 0x4, scoped, tag = 'scoped memory for mlp_forward.1']
    %8 = vsyncpa [#allocation3], 0
    %9 = vsyncpa [#allocation5], 0
    // Predicated region
    $region2: #{mlp_forward.1} parent=1 // pred_check
      _
    $region3: #{mlp_forward.1} parent=1 // pred_check_branch
      %11 = sbr.rel (0) target = $region5
    $region4: #{mlp_forward.1} parent=1 // pred_region
      %s13 = ssub.s32 128, 128
      %14 = vsyncadd [#allocation3], %s13
      %s16 = sshll.u32 [#allocation2], 4
      %s17 = int_to_ptr.vmem [resolvable:$true] %s16
      %19 = dma.hbm_to_vmem [thread:$0]  %s0, 128, %s17, [#allocation3]
    $region5: #{mlp_forward.1} parent=1 // pred_fallthru
      _
    // Predicated region
    $region6: #{mlp_forward.1} parent=1 // pred_check
      _
    $region7: #{mlp_forward.1} parent=1 // pred_check_branch
      %21 = sbr.rel (0) target = $region9
    $region8: #{mlp_forward.1} parent=1 // pred_region
      %s23 = ssub.s32 8192, 8192
      %24 = vsyncadd [#allocation5], %s23
      %s25 = sshll.u32 [#allocation4], 4
      %s26 = int_to_ptr.vmem [resolvable:$true] %s25
      %31 = dma.hbm_to_vmem [thread:$0]  %s1, 8192, %s26, [#allocation5], 128, 128, 8
    $region9: #{mlp_forward.1} parent=1 // pred_fallthru
      _
    // Predicated region
    $region10: #{mlp_forward.1} parent=1 // pred_check
      _
    $region11: #{mlp_forward.1} parent=1 // pred_check_branch
      %33 = sbr.rel (0) target = $region13
    $region12: #{mlp_forward.1} parent=1 // pred_region
      _
    $region13: #{mlp_forward.1} parent=1 // pred_fallthru
      _
    // Predicated region
    $region14: #{mlp_forward.1} parent=1 // pred_check
      _
    $region15: #{mlp_forward.1} parent=1 // pred_check_branch
      %35 = sbr.rel (0) target = $region17
    $region16: #{mlp_forward.1} parent=1 // pred_region
      %36 = dma.done [#allocation3], 128
    $region17: #{mlp_forward.1} parent=1 // pred_fallthru
      _
    // Predicated region
    $region18: #{mlp_forward.1} parent=1 // pred_check
      _
    $region19: #{mlp_forward.1} parent=1 // pred_check_branch
      %38 = sbr.rel (0) target = $region21
    $region20: #{mlp_forward.1} parent=1 // pred_region
      %39 = dma.done [#allocation5], 8192
    $region21: #{mlp_forward.1} parent=1 // pred_fallthru
      _
    %v40 = vld [vmem:[#allocation2] sm:$0xff]
    %vm41 = vcmask 343040
    %v42 = vsel %vm41, %v40, 0.0
    %v43 = vld [vmem:[#allocation4] sm:$0xff]
    %v44 = vld [vmem:[#allocation4 + $0x8] sm:$0xff]
    %v45 = vld [vmem:[#allocation4 + $0x10] sm:$0xff]
    %v46 = vld [vmem:[#allocation4 + $0x18] sm:$0xff]
    %v47 = vld [vmem:[#allocation4 + $0x20] sm:$0xff]
    %v48 = vld [vmem:[#allocation4 + $0x28] sm:$0xff]
    %v49 = vld [vmem:[%s2] sm:$0x1]
    %v51 = vlaneseq
    %v52 = vshrl.u32 %v51, 7
    %v53 = vsub.s32 0, %v52
    %v54 = vrot.slane %v49, %v53
    %vm56 = vcmask 392192
    %v58 = vsel %vm56, %v42, 0
    %60 = vmatprep.subr.mxu0 0.0
    %61 = vmatpush1.msra.mxu0 %v43
    %62 = vmatprep.subr.mxu0 0.0
    %63 = vmatpush1.msra.mxu0 %v44
    %64 = vmatprep.subr.mxu0 0.0
    %65 = vmatpush1.msra.mxu0 %v45
    %66 = vmatprep.subr.mxu0 0.0
    %67 = vmatpush1.msra.mxu0 %v46
    %68 = vmatprep.subr.mxu0 0.0
    %69 = vmatpush1.msra.mxu0 %v47
    %70 = vmatprep.subr.mxu0 0.0
    %71 = vmatpush1.msra.mxu0 %v48
    %72 = vmatprep.subr.mxu0 0.0
    %73 = vmatpush1.msra.mxu0 0.0
    %74 = vmatprep.subr.mxu0 0.0
    %75 = vmatpush1.msra.mxu0 0.0
    %76 = vmatprep.subr.mxu0 0.0
    %77 = vmatpush1.msra.mxu0 0.0
    %78 = vmatprep.subr.mxu0 0.0
    %79 = vmatpush1.msra.mxu0 0.0
    %80 = vmatprep.subr.mxu0 0.0
    %81 = vmatpush1.msra.mxu0 0.0
    %82 = vmatprep.subr.mxu0 0.0
    %83 = vmatpush1.msra.mxu0 0.0
    %84 = vmatprep.subr.mxu0 0.0
    %85 = vmatpush1.msra.mxu0 0.0
    %86 = vmatprep.subr.mxu0 0.0
    %87 = vmatpush1.msra.mxu0 0.0
    %88 = vmatprep.subr.mxu0 0.0
    %89 = vmatpush1.msra.mxu0 0.0
    %90 = vmatprep.subr.mxu0 0.0
    %91 = vmatpush1.msra.mxu0 0.0
    %92 = vmatprep.subr.mxu0 0.0
    %93 = vmatpush1.msra.mxu0 0.0
    %94 = vmatprep.subr.mxu0 0.0
    %95 = vmatpush1.msra.mxu0 0.0
    %96 = vmatprep.subr.mxu0 0.0
    %97 = vmatpush1.msra.mxu0 0.0
    %98 = vmatprep.subr.mxu0 0.0
    %99 = vmatpush1.msra.mxu0 0.0
    %100 = vmatprep.subr.mxu0 0.0
    %101 = vmatpush1.msra.mxu0 0.0
    %102 = vmatprep.subr.mxu0 0.0
    %103 = vmatpush1.msra.mxu0 0.0
    %104 = vmatprep.subr.mxu0 0.0
    %105 = vmatpush1.msra.mxu0 0.0
    %106 = vmatprep.subr.mxu0 0.0
    %107 = vmatpush1.msra.mxu0 0.0
    %108 = vmatprep.subr.mxu0 0.0
    %109 = vmatpush1.msra.mxu0 0.0
    %110 = vmatprep.subr.mxu0 0.0
    %111 = vmatpush1.msra.mxu0 0.0
    %112 = vmatprep.subr.mxu0 0.0
    %113 = vmatpush1.msra.mxu0 0.0
    %114 = vmatprep.subr.mxu0 0.0
    %115 = vmatpush1.msra.mxu0 0.0
    %116 = vmatprep.subr.mxu0 0.0
    %117 = vmatpush1.msra.mxu0 0.0
    %118 = vmatprep.subr.mxu0 0.0
    %119 = vmatpush1.msra.mxu0 0.0
    %120 = vmatprep.subr.mxu0 0.0
    %121 = vmatpush1.msra.mxu0 0.0
    %122 = vmatprep.subr.mxu0 0.0
    %123 = vmatpush1.msra.mxu0 0.0
    %124 = vmatprep.mubr.f32.mxu0 0.0
    %125 = vmatmul.mubr.f32.gmra.mrb[0].mxu0 %v58
    %v126 = vpop.f32.mrb[0].mxu0
    %v127 = vadd.f32 %v54, %v126
    %v128 = vpop.f32.mrb[0].mxu0
    %129 = vdwg.mxu0
    %v130 = vmax.f32 %v127, 0.0
    %s131 = scalar_lea.vmem [#allocation4], 128
    %v132 = vld [vmem:[%s131] sm:$0xff]
    %v133 = vld [vmem:[%s131 + $0x8] sm:$0xff]
    %v134 = vld [vmem:[%s131 + $0x10] sm:$0xff]
    %v135 = vld [vmem:[%s131 + $0x18] sm:$0xff]
    %s136 = scalar_lea.vmem %s2, 1
    %v137 = vld [vmem:[%s136] sm:$0x1]
    %v139 = vlaneseq
    %v140 = vshrl.u32 %v139, 7
    %v141 = vsub.s32 0, %v140
    %v142 = vrot.slane %v137, %v141
    %vm144 = vcmask 261120
    %v146 = vsel %vm144, %v130, 0
    %148 = vmatprep.subr.mxu0 0.0
    %149 = vmatpush1.msra.mxu0 %v132
    %150 = vmatprep.subr.mxu0 0.0
    %151 = vmatpush1.msra.mxu0 %v133
    %152 = vmatprep.subr.mxu0 0.0
    %153 = vmatpush1.msra.mxu0 %v134
    %154 = vmatprep.subr.mxu0 0.0
    %155 = vmatpush1.msra.mxu0 %v135
    %156 = vmatprep.subr.mxu0 0.0
    %157 = vmatpush1.msra.mxu0 0.0
    %158 = vmatprep.subr.mxu0 0.0
    %159 = vmatpush1.msra.mxu0 0.0
    %160 = vmatprep.subr.mxu0 0.0
    %161 = vmatpush1.msra.mxu0 0.0
    %162 = vmatprep.subr.mxu0 0.0
    %163 = vmatpush1.msra.mxu0 0.0
    %164 = vmatprep.subr.mxu0 0.0
    %165 = vmatpush1.msra.mxu0 0.0
    %166 = vmatprep.subr.mxu0 0.0
    %167 = vmatpush1.msra.mxu0 0.0
    %168 = vmatprep.subr.mxu0 0.0
    %169 = vmatpush1.msra.mxu0 0.0
    %170 = vmatprep.subr.mxu0 0.0
    %171 = vmatpush1.msra.mxu0 0.0
    %172 = vmatprep.subr.mxu0 0.0
    %173 = vmatpush1.msra.mxu0 0.0
    %174 = vmatprep.subr.mxu0 0.0
    %175 = vmatpush1.msra.mxu0 0.0
    %176 = vmatprep.subr.mxu0 0.0
    %177 = vmatpush1.msra.mxu0 0.0
    %178 = vmatprep.subr.mxu0 0.0
    %179 = vmatpush1.msra.mxu0 0.0
    %180 = vmatprep.subr.mxu0 0.0
    %181 = vmatpush1.msra.mxu0 0.0
    %182 = vmatprep.subr.mxu0 0.0
    %183 = vmatpush1.msra.mxu0 0.0
    %184 = vmatprep.subr.mxu0 0.0
    %185 = vmatpush1.msra.mxu0 0.0
    %186 = vmatprep.subr.mxu0 0.0
    %187 = vmatpush1.msra.mxu0 0.0
    %188 = vmatprep.subr.mxu0 0.0
    %189 = vmatpush1.msra.mxu0 0.0
    %190 = vmatprep.subr.mxu0 0.0
    %191 = vmatpush1.msra.mxu0 0.0
    %192 = vmatprep.subr.mxu0 0.0
    %193 = vmatpush1.msra.mxu0 0.0
    %194 = vmatprep.subr.mxu0 0.0
    %195 = vmatpush1.msra.mxu0 0.0
    %196 = vmatprep.subr.mxu0 0.0
    %197 = vmatpush1.msra.mxu0 0.0
    %198 = vmatprep.subr.mxu0 0.0
    %199 = vmatpush1.msra.mxu0 0.0
    %200 = vmatprep.subr.mxu0 0.0
    %201 = vmatpush1.msra.mxu0 0.0
    %202 = vmatprep.subr.mxu0 0.0
    %203 = vmatpush1.msra.mxu0 0.0
    %204 = vmatprep.subr.mxu0 0.0
    %205 = vmatpush1.msra.mxu0 0.0
    %206 = vmatprep.subr.mxu0 0.0
    %207 = vmatpush1.msra.mxu0 0.0
    %208 = vmatprep.subr.mxu0 0.0
    %209 = vmatpush1.msra.mxu0 0.0
    %210 = vmatprep.subr.mxu0 0.0
    %211 = vmatpush1.msra.mxu0 0.0
    %212 = vmatprep.mubr.f32.mxu0 0.0
    %213 = vmatmul.mubr.f32.gmra.mrb[0].mxu0 %v146
    %v214 = vpop.f32.mrb[0].mxu0
    %v215 = vadd.f32 %v142, %v214
    %v216 = vpop.f32.mrb[0].mxu0
    %217 = vdwg.mxu0
    %v218 = vmax.f32 %v215, 0.0
    %s219 = scalar_lea.vmem [#allocation4], 256
    %v220 = vld [vmem:[%s219] sm:$0xff]
    %v221 = vld [vmem:[%s219 + $0x8] sm:$0xff]
    %v222 = vld [vmem:[%s219 + $0x10] sm:$0xff]
    %v223 = vld [vmem:[%s219 + $0x18] sm:$0xff]
    %v224 = vld [vmem:[%s219 + $0x20] sm:$0xff]
    %v225 = vld [vmem:[%s219 + $0x28] sm:$0xff]
    %v226 = vld [vmem:[%s219 + $0x30] sm:$0xff]
    %v227 = vld [vmem:[%s219 + $0x38] sm:$0xff]
    %s228 = scalar_lea.vmem %s2, 2
    %v229 = vld [vmem:[%s228] sm:$0x1]
    %v231 = vlaneseq
    %v232 = vshrl.u32 %v231, 7
    %v233 = vsub.s32 0, %v232
    %v234 = vrot.slane %v229, %v233
    %vm236 = vcmask 523264
    %v238 = vsel %vm236, %v218, 0
    %240 = vmatprep.subr.mxu0 0.0
    %241 = vmatpush1.msra.mxu0 %v220
    %242 = vmatprep.subr.mxu0 0.0
    %243 = vmatpush1.msra.mxu0 %v221
    %244 = vmatprep.subr.mxu0 0.0
    %245 = vmatpush1.msra.mxu0 %v222
    %246 = vmatprep.subr.mxu0 0.0
    %247 = vmatpush1.msra.mxu0 %v223
    %248 = vmatprep.subr.mxu0 0.0
    %249 = vmatpush1.msra.mxu0 %v224
    %250 = vmatprep.subr.mxu0 0.0
    %251 = vmatpush1.msra.mxu0 %v225
    %252 = vmatprep.subr.mxu0 0.0
    %253 = vmatpush1.msra.mxu0 %v226
    %254 = vmatprep.subr.mxu0 0.0
    %255 = vmatpush1.msra.mxu0 %v227
    %256 = vmatprep.subr.mxu0 0.0
    %257 = vmatpush1.msra.mxu0 0.0
    %258 = vmatprep.subr.mxu0 0.0
    %259 = vmatpush1.msra.mxu0 0.0
    %260 = vmatprep.subr.mxu0 0.0
    %261 = vmatpush1.msra.mxu0 0.0
    %262 = vmatprep.subr.mxu0 0.0
    %263 = vmatpush1.msra.mxu0 0.0
    %264 = vmatprep.subr.mxu0 0.0
    %265 = vmatpush1.msra.mxu0 0.0
    %266 = vmatprep.subr.mxu0 0.0
    %267 = vmatpush1.msra.mxu0 0.0
    %268 = vmatprep.subr.mxu0 0.0
    %269 = vmatpush1.msra.mxu0 0.0
    %270 = vmatprep.subr.mxu0 0.0
    %271 = vmatpush1.msra.mxu0 0.0
    %272 = vmatprep.subr.mxu0 0.0
    %273 = vmatpush1.msra.mxu0 0.0
    %274 = vmatprep.subr.mxu0 0.0
    %275 = vmatpush1.msra.mxu0 0.0
    %276 = vmatprep.subr.mxu0 0.0
    %277 = vmatpush1.msra.mxu0 0.0
    %278 = vmatprep.subr.mxu0 0.0
    %279 = vmatpush1.msra.mxu0 0.0
    %280 = vmatprep.subr.mxu0 0.0
    %281 = vmatpush1.msra.mxu0 0.0
    %282 = vmatprep.subr.mxu0 0.0
    %283 = vmatpush1.msra.mxu0 0.0
    %284 = vmatprep.subr.mxu0 0.0
    %285 = vmatpush1.msra.mxu0 0.0
    %286 = vmatprep.subr.mxu0 0.0
    %287 = vmatpush1.msra.mxu0 0.0
    %288 = vmatprep.subr.mxu0 0.0
    %289 = vmatpush1.msra.mxu0 0.0
    %290 = vmatprep.subr.mxu0 0.0
    %291 = vmatpush1.msra.mxu0 0.0
    %292 = vmatprep.subr.mxu0 0.0
    %293 = vmatpush1.msra.mxu0 0.0
    %294 = vmatprep.subr.mxu0 0.0
    %295 = vmatpush1.msra.mxu0 0.0
    %296 = vmatprep.subr.mxu0 0.0
    %297 = vmatpush1.msra.mxu0 0.0
    %298 = vmatprep.subr.mxu0 0.0
    %299 = vmatpush1.msra.mxu0 0.0
    %300 = vmatprep.subr.mxu0 0.0
    %301 = vmatpush1.msra.mxu0 0.0
    %302 = vmatprep.subr.mxu0 0.0
    %303 = vmatpush1.msra.mxu0 0.0
    %304 = vmatprep.mubr.f32.mxu0 0.0
    %305 = vmatmul.mubr.f32.gmra.mrb[0].mxu0 %v238
    %v306 = vpop.f32.mrb[0].mxu0
    %v307 = vadd.f32 %v234, %v306
    %v308 = vpop.f32.mrb[0].mxu0
    %309 = vdwg.mxu0
    %v310 = vmax.f32 %v307, 0.0
    %s311 = scalar_lea.vmem [#allocation4], 384
    %v312 = vld [vmem:[%s311] sm:$0xff]
    %v313 = vld [vmem:[%s311 + $0x8] sm:$0xff]
    %v314 = vld [vmem:[%s311 + $0x10] sm:$0xff]
    %v315 = vld [vmem:[%s311 + $0x18] sm:$0xff]
    %v316 = vld [vmem:[%s311 + $0x20] sm:$0xff]
    %v317 = vld [vmem:[%s311 + $0x28] sm:$0xff]
    %v318 = vld [vmem:[%s311 + $0x30] sm:$0xff]
    %v319 = vld [vmem:[%s311 + $0x38] sm:$0xff]
    %v320 = vld [vmem:[%s311 + $0x40] sm:$0xff]
    %v321 = vld [vmem:[%s311 + $0x48] sm:$0xff]
    %v322 = vld [vmem:[%s311 + $0x50] sm:$0xff]
    %v323 = vld [vmem:[%s311 + $0x58] sm:$0xff]
    %v324 = vld [vmem:[%s311 + $0x60] sm:$0xff]
    %v325 = vld [vmem:[%s311 + $0x68] sm:$0xff]
    %v326 = vld [vmem:[%s311 + $0x70] sm:$0xff]
    %v327 = vld [vmem:[%s311 + $0x78] sm:$0xff]
    %s328 = scalar_lea.vmem %s2, 3
    %v329 = vld [vmem:[%s328] sm:$0x1]
    %v331 = vlaneseq
    %v332 = vshrl.u32 %v331, 7
    %v333 = vsub.s32 0, %v332
    %v334 = vrot.slane %v329, %v333
    %336 = vmatprep.subr.mxu0 0.0
    %337 = vmatpush1.msra.mxu0 %v312
    %338 = vmatprep.subr.mxu0 0.0
    %339 = vmatpush1.msra.mxu0 %v313
    %340 = vmatprep.subr.mxu0 0.0
    %341 = vmatpush1.msra.mxu0 %v314
    %342 = vmatprep.subr.mxu0 0.0
    %343 = vmatpush1.msra.mxu0 %v315
    %344 = vmatprep.subr.mxu0 0.0
    %345 = vmatpush1.msra.mxu0 %v316
    %346 = vmatprep.subr.mxu0 0.0
    %347 = vmatpush1.msra.mxu0 %v317
    %348 = vmatprep.subr.mxu0 0.0
    %349 = vmatpush1.msra.mxu0 %v318
    %350 = vmatprep.subr.mxu0 0.0
    %351 = vmatpush1.msra.mxu0 %v319
    %352 = vmatprep.subr.mxu0 0.0
    %353 = vmatpush1.msra.mxu0 %v320
    %354 = vmatprep.subr.mxu0 0.0
    %355 = vmatpush1.msra.mxu0 %v321
    %356 = vmatprep.subr.mxu0 0.0
    %357 = vmatpush1.msra.mxu0 %v322
    %358 = vmatprep.subr.mxu0 0.0
    %359 = vmatpush1.msra.mxu0 %v323
    %360 = vmatprep.subr.mxu0 0.0
    %361 = vmatpush1.msra.mxu0 %v324
    %362 = vmatprep.subr.mxu0 0.0
    %363 = vmatpush1.msra.mxu0 %v325
    %364 = vmatprep.subr.mxu0 0.0
    %365 = vmatpush1.msra.mxu0 %v326
    %366 = vmatprep.subr.mxu0 0.0
    %367 = vmatpush1.msra.mxu0 %v327
    %368 = vmatprep.subr.mxu0 0.0
    %369 = vmatpush1.msra.mxu0 0.0
    %370 = vmatprep.subr.mxu0 0.0
    %371 = vmatpush1.msra.mxu0 0.0
    %372 = vmatprep.subr.mxu0 0.0
    %373 = vmatpush1.msra.mxu0 0.0
    %374 = vmatprep.subr.mxu0 0.0
    %375 = vmatpush1.msra.mxu0 0.0
    %376 = vmatprep.subr.mxu0 0.0
    %377 = vmatpush1.msra.mxu0 0.0
    %378 = vmatprep.subr.mxu0 0.0
    %379 = vmatpush1.msra.mxu0 0.0
    %380 = vmatprep.subr.mxu0 0.0
    %381 = vmatpush1.msra.mxu0 0.0
    %382 = vmatprep.subr.mxu0 0.0
    %383 = vmatpush1.msra.mxu0 0.0
    %384 = vmatprep.subr.mxu0 0.0
    %385 = vmatpush1.msra.mxu0 0.0
    %386 = vmatprep.subr.mxu0 0.0
    %387 = vmatpush1.msra.mxu0 0.0
    %388 = vmatprep.subr.mxu0 0.0
    %389 = vmatpush1.msra.mxu0 0.0
    %390 = vmatprep.subr.mxu0 0.0
    %391 = vmatpush1.msra.mxu0 0.0
    %392 = vmatprep.subr.mxu0 0.0
    %393 = vmatpush1.msra.mxu0 0.0
    %394 = vmatprep.subr.mxu0 0.0
    %395 = vmatpush1.msra.mxu0 0.0
    %396 = vmatprep.subr.mxu0 0.0
    %397 = vmatpush1.msra.mxu0 0.0
    %398 = vmatprep.subr.mxu0 0.0
    %399 = vmatpush1.msra.mxu0 0.0
    %400 = vmatprep.mubr.f32.mxu0 0.0
    %401 = vmatmul.mubr.f32.gmra.mrb[0].mxu0 %v310
    %v402 = vpop.f32.mrb[0].mxu0
    %v403 = vadd.f32 %v334, %v402
    %v404 = vpop.f32.mrb[0].mxu0
    %405 = vdwg.mxu0
    %vm406 = vcmask 23552
    %407 = vst.msk [vmem:[%s3] sm:$0xff] %vm406, %v403
    // Predicated region
    $region22: #{mlp_forward.1} parent=1 // pred_check
      _
    $region23: #{mlp_forward.1} parent=1 // pred_check_branch
      %409 = sbr.rel (0) target = $region25
    $region24: #{mlp_forward.1} parent=1 // pred_region
      _
    $region25: #{mlp_forward.1} parent=1 // pred_fallthru
      _
    // Predicated region
    $region26: #{mlp_forward.1} parent=1 // pred_check
      _
    $region27: #{mlp_forward.1} parent=1 // pred_check_branch
      %411 = sbr.rel (0) target = $region29
    $region28: #{mlp_forward.1} parent=1 // pred_region
      _
    $region29: #{mlp_forward.1} parent=1 // pred_fallthru
      _
    %412 = vsyncpa [#allocation3], 1
    %413 = vsyncpa [#allocation5], 1

</llo_original>
